<compile_context>
chip_gen: v7x
topology: tpu7x:2x2x1
jax: 0.10.0
libtpu: 0.0.40
codegen_flags: <defaults>
</compile_context>

<pallas_src>
import jax
import jax.numpy as jnp
from jax.experimental import pallas as pl
from jax.experimental.pallas import tpu as pltpu


def _round_up(x, m):
    return (x + m - 1) // m * m


def _postprocess_kernel(obj_logits_ref,   # (R, C)   f32
                        verb_logits_ref,  # (R, V)   f32
                        side_ref,         # (R, 16)  f32  [ctr(4)|wh(4)|scale(4)|inter(1)|pad(3)]
                        cmat_ref,         # (C, V)   bf16 correct_mat^T (exact 0/1)
                        hoi_ref,          # out (R, V)  f32
                        packed_ref):      # out (R, 16) f32 [mins(4)|maxs(4)|score|label|pad(6)]
    logits = obj_logits_ref[...]                               # (R, C)
    R, C = logits.shape
    col = jax.lax.broadcasted_iota(jnp.int32, (R, C), 1)

    # ---- softmax stats only (no full prob tile, no per-element division) ----
    m_all = jnp.max(logits, axis=-1, keepdims=True)            # (R, 1)
    denom = jnp.sum(jnp.exp(logits - m_all), axis=-1, keepdims=True)

    # foreground = drop trailing "no-object" class via an iota mask (no lane slice)
    fg = jnp.where(col < C - 1, logits, -jnp.inf)
    fg_max = jnp.max(fg, axis=-1, keepdims=True)
    # Per-row divide only -> negligible; approx=True (EUP) is a free alternative if
    # ~1e-3 relative error on scores is acceptable downstream.
    obj_scores = jnp.exp(fg_max - m_all) * pl.reciprocal(denom, approx=False)  # (R,1)

    # first-occurrence argmax on masked logits (monotonic wrt softmax)
    cand = jnp.where(fg == fg_max, col, jnp.int32(C))
    obj_labels = jnp.min(cand, axis=-1, keepdims=True)          # (R, 1) int32

    # ---- correct_mat gather: masks[r, v] = correct_mat[v, obj_label[r]] ----
    # one-hot matmul in bf16 (values are exactly 0/1, so bf16 is exact) -> MXU
    onehot = (obj_labels == col).astype(jnp.bfloat16)            # (R, C)
    masks = jnp.dot(onehot, cmat_ref[...],
                    preferred_element_type=jnp.float32)          # (R, V)

    # ---- hoi scores: gate is per-row, so only 2 full-width multiplies ----
    inter = side_ref[:, 12:13]                                   # (R, 1)
    gate = jax.nn.sigmoid(inter) * obj_scores                    # (R, 1)
    hoi_ref[...] = jax.nn.sigmoid(verb_logits_ref[...]) * masks * gate

    # ---- boxes: purely elementwise cxcywh -> xyxy, scaled by (w, h, w, h) ----
    ctr = side_ref[:, 0:4]                                       # [s_cx, s_cy, o_cx, o_cy]
    wh = side_ref[:, 4:8]                                        # [s_w,  s_h,  o_w,  o_h ]
    scale = side_ref[:, 8:12]                                    # [img_w, img_h, img_w, img_h]
    half = 0.5 * wh
    mins = (ctr - half) * scale                                  # [s_x1, s_y1, o_x1, o_y1]
    maxs = (ctr + half) * scale                                  # [s_x2, s_y2, o_x2, o_y2]

    packed_ref[:, 0:4] = mins
    packed_ref[:, 4:8] = maxs
    packed_ref[:, 8:9] = obj_scores
    packed_ref[:, 9:10] = obj_labels.astype(jnp.float32)   # exact for class ids < 2**24
    packed_ref[:, 10:16] = jnp.zeros((R, 6), jnp.float32)  # deterministic pad lanes


def postprocess_hoi(target_sizes, obj_logits, verb_logits, interactiveness,
                    sub_boxes, obj_boxes, correct_mat, *, block_rows=512):
    """Dense part of PostProcessHOI.forward.

    correct_mat: [V, C] (already has the extra ones-column concatenated).
    block_rows: rows per grid step over the flattened B*Q axis (512-2048 keeps the
      kernel near the HBM roofline while the BlockSpec pipeline double-buffers; on
      v7x any N > block_rows automatically yields >=2 'parallel' steps for the two
      TensorCores).
    """
    B, Q, C = obj_logits.shape
    V = verb_logits.shape[-1]
    N = B * Q
    f32 = jnp.float32

    # ---- flatten B*Q onto the sublane axis (wrapper-side layout plumbing) ----
    logits_f = obj_logits.astype(f32).reshape(N, C)
    verb_f = verb_logits.astype(f32).reshape(N, V)
    inter_f = interactiveness.astype(f32).reshape(N, 1)

    sub = sub_boxes.astype(f32).reshape(N, 4)
    obj = obj_boxes.astype(f32).reshape(N, 4)
    ctr_f = jnp.concatenate([sub[:, 0:2], obj[:, 0:2]], axis=-1)   # (N, 4)
    wh_f = jnp.concatenate([sub[:, 2:4], obj[:, 2:4]], axis=-1)    # (N, 4)

    ts = jnp.asarray(target_sizes).astype(f32)                     # (B, 2) = (h, w)
    img_h, img_w = ts[:, 0], ts[:, 1]
    scale4 = jnp.stack([img_w, img_h, img_w, img_h], axis=1)       # (B, 4)
    scale_f = jnp.broadcast_to(scale4[:, None, :], (B, Q, 4)).reshape(N, 4)

    # Single fused lane-dense-ish side slab: [ctr(4) | wh(4) | scale(4) | inter(1) | 0(3)]
    side = jnp.concatenate([ctr_f, wh_f, scale_f, inter_f,
                            jnp.zeros((N, 3), f32)], axis=-1)       # (N, 16)

    cmat_t = jnp.asarray(correct_mat, f32).T.astype(jnp.bfloat16)   # (C, V), exact 0/1

    # ---- row tiling (no HBM padding; ragged tail handled by Pallas OOB masking) ----
    R = int(_round_up(min(block_rows, N), 16))      # multiple of 16 for bf16 MXU LHS
    grid_steps = pl.cdiv(N, R)

    # per-block VMEM footprint (lane-padded to 128), double-buffered, + headroom
    def _lane(n):
        return _round_up(max(n, 1), 128)
    row_bytes = 4 * (_lane(C) + 2 * _lane(V) + 2 * _lane(16))
    cmat_bytes = 2 * _round_up(C, 16) * _lane(V)
    block_bytes = 2 * (R * row_bytes + cmat_bytes)
    vmem_limit = int(min(64 * 2 ** 20, max(32 * 2 ** 20, 2 * block_bytes)))

    in_specs = [
        pl.BlockSpec((R, C), lambda i: (i, 0)),
        pl.BlockSpec((R, V), lambda i: (i, 0)),
        pl.BlockSpec((R, 16), lambda i: (i, 0)),
        pl.BlockSpec((C, V), lambda i: (0, 0)),
    ]
    out_specs = [
        pl.BlockSpec((R, V), lambda i: (i, 0)),
        pl.BlockSpec((R, 16), lambda i: (i, 0)),
    ]
    out_shapes = (
        jax.ShapeDtypeStruct((N, V), f32),      # hoi scores (natural verb width)
        jax.ShapeDtypeStruct((N, 16), f32),     # packed boxes/scores/labels
    )

    hoi_flat, packed = pl.pallas_call(
        _postprocess_kernel,
        grid=(grid_steps,),
        in_specs=in_specs,
        out_specs=out_specs,
        out_shape=out_shapes,
        compiler_params=pltpu.CompilerParams(
            dimension_semantics=("parallel",),
            vmem_limit_bytes=vmem_limit),
    )(logits_f, verb_f, side, cmat_t)

    # ---- unpack (cheap XLA slices / reshapes) ----
    hoi_scores = hoi_flat.reshape(B, Q, V)
    sub_xyxy = jnp.concatenate([packed[:, 0:2], packed[:, 4:6]], axis=-1).reshape(B, Q, 4)
    obj_xyxy = jnp.concatenate([packed[:, 2:4], packed[:, 6:8]], axis=-1).reshape(B, Q, 4)
    obj_scores = packed[:, 8].reshape(B, Q)
    obj_labels = packed[:, 9].astype(jnp.int32).reshape(B, Q)
    return obj_scores, obj_labels, hoi_scores, sub_xyxy, obj_xyxy


def _reference(target_sizes, obj_logits, verb_logits, inter, sub_boxes, obj_boxes,
               correct_mat):
    prob = jax.nn.softmax(obj_logits, -1)
    obj_scores = prob[..., :-1].max(-1)
    obj_labels = prob[..., :-1].argmax(-1).astype(jnp.int32)
    verb_scores = jax.nn.sigmoid(verb_logits) * jax.nn.sigmoid(inter)
    img_h = target_sizes[:, 0].astype(jnp.float32)
    img_w = target_sizes[:, 1].astype(jnp.float32)
    scale = jnp.stack([img_w, img_h, img_w, img_h], axis=1)  # (B, 4)

    def cxcywh_to_xyxy(b):
        cx, cy, w, h = b[..., 0], b[..., 1], b[..., 2], b[..., 3]
        return jnp.stack([cx - 0.5 * w, cy - 0.5 * h, cx + 0.5 * w, cy + 0.5 * h],
                         axis=-1)

    sub_xyxy = cxcywh_to_xyxy(sub_boxes) * scale[:, None, :]
    obj_xyxy = cxcywh_to_xyxy(obj_boxes) * scale[:, None, :]
    hoi = verb_scores * obj_scores[..., None]
    masks = correct_mat.T[obj_labels]                        # (B, Q, V)
    hoi = hoi * masks
    return obj_scores, obj_labels, hoi, sub_xyxy, obj_xyxy


if __name__ == "__main__":
    key = jax.random.PRNGKey(0)
    B, Q, C, V = 2, 64, 12, 16               # batch, num_queries, obj classes(+no-obj), verbs
    k1, k2, k3, k4, k5, k6 = jax.random.split(key, 6)

    obj_logits = jax.random.normal(k1, (B, Q, C), dtype=jnp.float32)
    verb_logits = jax.random.normal(k2, (B, Q, V), dtype=jnp.float32)
    interactiveness = jax.random.normal(k3, (B, Q, 1), dtype=jnp.float32)
    sub_boxes = jax.random.uniform(k4, (B, Q, 4), dtype=jnp.float32, minval=0.1, maxval=0.9)
    obj_boxes = jax.random.uniform(k5, (B, Q, 4), dtype=jnp.float32, minval=0.1, maxval=0.9)
    target_sizes = jnp.array([[480, 640], [360, 512]], dtype=jnp.int32)   # (h, w)

    # Deterministic "correct_mat" buffer: [V, C-1] binary, then the module's
    # concat of an all-ones column -> [V, C].
    correct_mat = (jax.random.uniform(k6, (V, C - 1)) > 0.3).astype(jnp.float32)
    correct_mat = jnp.concatenate([correct_mat, jnp.ones((V, 1), jnp.float32)], axis=1)

    # block_rows=64 with N=128 exercises a 2-step pipelined (parallel) grid.
    out = postprocess_hoi(target_sizes, obj_logits, verb_logits, interactiveness,
                          sub_boxes, obj_boxes, correct_mat, block_rows=64)
    out = jax.block_until_ready(out)

    ref = _reference(target_sizes, obj_logits, verb_logits, interactiveness,
                     sub_boxes, obj_boxes, correct_mat)

    obj_scores, obj_labels, hoi_scores, sub_xyxy, obj_xyxy = out
    r_scores, r_labels, r_hoi, r_sub, r_obj = ref
    assert jnp.allclose(obj_scores, r_scores, rtol=1e-5, atol=1e-5)
    assert jnp.array_equal(obj_labels, r_labels)
    assert jnp.allclose(hoi_scores, r_hoi, rtol=1e-5, atol=1e-5)
    assert jnp.allclose(sub_xyxy, r_sub, rtol=1e-5, atol=1e-3)
    assert jnp.allclose(obj_xyxy, r_obj, rtol=1e-5, atol=1e-3)

    print("KERNEL_OK")
</pallas_src>

<mosaic_0001>
module attributes {stable_mosaic.version = 11 : i64} {
  func.func @_postprocess_kernel(%arg0: i32, %arg1: memref<64x12xf32, #tpu.memory_space<vmem>>, %arg2: memref<64x16xf32, #tpu.memory_space<vmem>>, %arg3: memref<64x16xf32, #tpu.memory_space<vmem>>, %arg4: memref<12x16xbf16, #tpu.memory_space<vmem>>, %arg5: memref<64x16xf32, #tpu.memory_space<vmem>>, %arg6: memref<64x16xf32, #tpu.memory_space<vmem>>) attributes {dimension_semantics = [#tpu.dimension_semantics<parallel>], iteration_bounds = array<i64: 2>, scalar_prefetch = 0 : i64, scratch_operands = 0 : i64, tpu.core_type = #tpu.core_type<tc>, window_params = [{transform_indices = @transform_0, window_bounds = array<i64: 64, 12>}, {transform_indices = @transform_1, window_bounds = array<i64: 64, 16>}, {transform_indices = @transform_2, window_bounds = array<i64: 64, 16>}, {pipeline_mode = #tpu.pipeline_mode<synchronous>, transform_indices = @transform_3, window_bounds = array<i64: 12, 16>}, {transform_indices = @transform_4, window_bounds = array<i64: 64, 16>}, {transform_indices = @transform_5, window_bounds = array<i64: 64, 16>}]} {
    %c0 = arith.constant 0 : index
    %c0_0 = arith.constant 0 : index
    %0 = vector.load %arg1[%c0, %c0_0] : memref<64x12xf32, #tpu.memory_space<vmem>>, vector<64x12xf32>
    %1 = tpu.iota {dimensions = array<i32: 1>} : vector<64x12xi32>
    %cst = arith.constant dense<0xFF800000> : vector<64xf32>
    %2 = vector.multi_reduction <maximumf>, %0, %cst [1] : vector<64x12xf32> to vector<64xf32>
    %3 = vector.shape_cast %2 : vector<64xf32> to vector<64x1xf32>
    %4 = vector.broadcast %3 : vector<64x1xf32> to vector<64x12xf32>
    %5 = arith.subf %0, %4 : vector<64x12xf32>
    %6 = math.exp %5 : vector<64x12xf32>
    %cst_1 = arith.constant dense<0.000000e+00> : vector<64xf32>
    %7 = vector.multi_reduction <add>, %6, %cst_1 [1] : vector<64x12xf32> to vector<64xf32>
    %8 = vector.shape_cast %7 : vector<64xf32> to vector<64x1xf32>
    %c11_i32 = arith.constant 11 : i32
    %9 = vector.broadcast %c11_i32 : i32 to vector<64x12xi32>
    %10 = arith.cmpi slt, %1, %9 : vector<64x12xi32>
    %cst_2 = arith.constant 0xFF800000 : f32
    %11 = vector.broadcast %cst_2 : f32 to vector<64x12xf32>
    %12 = arith.select %10, %0, %11 : vector<64x12xi1>, vector<64x12xf32>
    %cst_3 = arith.constant dense<0xFF800000> : vector<64xf32>
    %13 = vector.multi_reduction <maximumf>, %12, %cst_3 [1] : vector<64x12xf32> to vector<64xf32>
    %14 = vector.shape_cast %13 : vector<64xf32> to vector<64x1xf32>
    %15 = arith.subf %14, %3 : vector<64x1xf32>
    %16 = math.exp %15 : vector<64x1xf32>
    %17 = tpu.reciprocal %8 : vector<64x1xf32> -> vector<64x1xf32>
    %18 = arith.mulf %16, %17 : vector<64x1xf32>
    %19 = vector.broadcast %14 : vector<64x1xf32> to vector<64x12xf32>
    %20 = arith.cmpf oeq, %12, %19 : vector<64x12xf32>
    %c12_i32 = arith.constant 12 : i32
    %21 = vector.broadcast %c12_i32 : i32 to vector<64x12xi32>
    %22 = arith.select %20, %1, %21 : vector<64x12xi1>, vector<64x12xi32>
    %cst_4 = arith.constant dense<2147483647> : vector<64xi32>
    %23 = vector.multi_reduction <minsi>, %22, %cst_4 [1] : vector<64x12xi32> to vector<64xi32>
    %24 = vector.shape_cast %23 : vector<64xi32> to vector<64x1xi32>
    %25 = vector.broadcast %24 : vector<64x1xi32> to vector<64x12xi32>
    %26 = arith.cmpi eq, %25, %1 : vector<64x12xi32>
    %27 = arith.extui %26 : vector<64x12xi1> to vector<64x12xi32>
    %28 = arith.sitofp %27 : vector<64x12xi32> to vector<64x12xf32>
    %29 = arith.truncf %28 : vector<64x12xf32> to vector<64x12xbf16>
    %c0_5 = arith.constant 0 : index
    %c0_6 = arith.constant 0 : index
    %30 = vector.load %arg4[%c0_5, %c0_6] : memref<12x16xbf16, #tpu.memory_space<vmem>>, vector<12x16xbf16>
    %cst_7 = arith.constant dense<0.000000e+00> : vector<64x16xf32>
    %31 = tpu.matmul %29, %30, %cst_7 {dimension_numbers = #tpu.dot_dimension_numbers<[1], [0], [0], [1], [0, 0, 1, 1], [], []>} : vector<64x12xbf16>, vector<12x16xbf16>, vector<64x16xf32> -> vector<64x16xf32>
    %c0_8 = arith.constant 0 : index
    %c12 = arith.constant 12 : index
    %32 = vector.load %arg3[%c0_8, %c12] : memref<64x16xf32, #tpu.memory_space<vmem>>, vector<64x1xf32>
    %33 = arith.negf %32 : vector<64x1xf32>
    %34 = math.exp %33 : vector<64x1xf32>
    %cst_9 = arith.constant 1.000000e+00 : f32
    %35 = vector.broadcast %cst_9 : f32 to vector<64x1xf32>
    %36 = arith.addf %35, %34 : vector<64x1xf32>
    %37 = arith.divf %35, %36 : vector<64x1xf32>
    %38 = arith.mulf %37, %18 : vector<64x1xf32>
    %c0_10 = arith.constant 0 : index
    %c0_11 = arith.constant 0 : index
    %39 = vector.load %arg2[%c0_10, %c0_11] : memref<64x16xf32, #tpu.memory_space<vmem>>, vector<64x16xf32>
    %40 = arith.negf %39 : vector<64x16xf32>
    %41 = math.exp %40 : vector<64x16xf32>
    %cst_12 = arith.constant 1.000000e+00 : f32
    %42 = vector.broadcast %cst_12 : f32 to vector<64x16xf32>
    %43 = arith.addf %42, %41 : vector<64x16xf32>
    %44 = arith.divf %42, %43 : vector<64x16xf32>
    %45 = arith.mulf %44, %31 : vector<64x16xf32>
    %46 = vector.broadcast %38 : vector<64x1xf32> to vector<64x16xf32>
    %47 = arith.mulf %45, %46 : vector<64x16xf32>
    %c0_13 = arith.constant 0 : index
    %c0_14 = arith.constant 0 : index
    %48 = vector.load %arg5[%c0_13, %c0_14] : memref<64x16xf32, #tpu.memory_space<vmem>>, vector<64x16xf32>
    tpu.vector_store %arg5[%c0_13, %c0_14], %47 {strides = array<i32>} : memref<64x16xf32, #tpu.memory_space<vmem>>, vector<64x16xf32>,
    %c0_15 = arith.constant 0 : index
    %c0_16 = arith.constant 0 : index
    %49 = vector.load %arg3[%c0_15, %c0_16] : memref<64x16xf32, #tpu.memory_space<vmem>>, vector<64x4xf32>
    %c0_17 = arith.constant 0 : index
    %c4 = arith.constant 4 : index
    %50 = vector.load %arg3[%c0_17, %c4] : memref<64x16xf32, #tpu.memory_space<vmem>>, vector<64x4xf32>
    %c0_18 = arith.constant 0 : index
    %c8 = arith.constant 8 : index
    %51 = vector.load %arg3[%c0_18, %c8] : memref<64x16xf32, #tpu.memory_space<vmem>>, vector<64x4xf32>
    %cst_19 = arith.constant 5.000000e-01 : f32
    %52 = vector.broadcast %cst_19 : f32 to vector<64x4xf32>
    %53 = arith.mulf %52, %50 : vector<64x4xf32>
    %54 = arith.subf %49, %53 : vector<64x4xf32>
    %55 = arith.mulf %54, %51 : vector<64x4xf32>
    %56 = arith.addf %49, %53 : vector<64x4xf32>
    %57 = arith.mulf %56, %51 : vector<64x4xf32>
    %c0_20 = arith.constant 0 : index
    %c0_21 = arith.constant 0 : index
    %58 = vector.load %arg6[%c0_20, %c0_21] : memref<64x16xf32, #tpu.memory_space<vmem>>, vector<64x4xf32>
    tpu.vector_store %arg6[%c0_20, %c0_21], %55 {strides = array<i32>} : memref<64x16xf32, #tpu.memory_space<vmem>>, vector<64x4xf32>,
    %c0_22 = arith.constant 0 : index
    %c4_23 = arith.constant 4 : index
    %59 = vector.load %arg6[%c0_22, %c4_23] : memref<64x16xf32, #tpu.memory_space<vmem>>, vector<64x4xf32>
    tpu.vector_store %arg6[%c0_22, %c4_23], %57 {strides = array<i32>} : memref<64x16xf32, #tpu.memory_space<vmem>>, vector<64x4xf32>,
    %c0_24 = arith.constant 0 : index
    %c8_25 = arith.constant 8 : index
    %60 = vector.load %arg6[%c0_24, %c8_25] : memref<64x16xf32, #tpu.memory_space<vmem>>, vector<64x1xf32>
    tpu.vector_store %arg6[%c0_24, %c8_25], %18 {strides = array<i32>} : memref<64x16xf32, #tpu.memory_space<vmem>>, vector<64x1xf32>,
    %61 = arith.sitofp %24 : vector<64x1xi32> to vector<64x1xf32>
    %c0_26 = arith.constant 0 : index
    %c9 = arith.constant 9 : index
    %62 = vector.load %arg6[%c0_26, %c9] : memref<64x16xf32, #tpu.memory_space<vmem>>, vector<64x1xf32>
    tpu.vector_store %arg6[%c0_26, %c9], %61 {strides = array<i32>} : memref<64x16xf32, #tpu.memory_space<vmem>>, vector<64x1xf32>,
    %cst_27 = arith.constant 0.000000e+00 : f32
    %63 = vector.broadcast %cst_27 : f32 to vector<64x6xf32>
    %c0_28 = arith.constant 0 : index
    %c10 = arith.constant 10 : index
    %64 = vector.load %arg6[%c0_28, %c10] : memref<64x16xf32, #tpu.memory_space<vmem>>, vector<64x6xf32>
    tpu.vector_store %arg6[%c0_28, %c10], %63 {strides = array<i32>} : memref<64x16xf32, #tpu.memory_space<vmem>>, vector<64x6xf32>,
    return
  }
  func.func @transform_0(%arg0: i32) -> (i32, i32) {
    %c0_i32 = arith.constant 0 : i32
    %c0_i32_0 = arith.constant 0 : i32
    return %arg0, %c0_i32 : i32, i32
  }
  func.func @transform_1(%arg0: i32) -> (i32, i32) {
    %c0_i32 = arith.constant 0 : i32
    %c0_i32_0 = arith.constant 0 : i32
    return %arg0, %c0_i32 : i32, i32
  }
  func.func @transform_2(%arg0: i32) -> (i32, i32) {
    %c0_i32 = arith.constant 0 : i32
    %c0_i32_0 = arith.constant 0 : i32
    return %arg0, %c0_i32 : i32, i32
  }
  func.func @transform_3(%arg0: i32) -> (i32, i32) {
    %c0_i32 = arith.constant 0 : i32
    %c0_i32_0 = arith.constant 0 : i32
    %c0_i32_1 = arith.constant 0 : i32
    return %c0_i32, %c0_i32_0 : i32, i32
  }
  func.func @transform_4(%arg0: i32) -> (i32, i32) {
    %c0_i32 = arith.constant 0 : i32
    %c0_i32_0 = arith.constant 0 : i32
    return %arg0, %c0_i32 : i32, i32
  }
  func.func @transform_5(%arg0: i32) -> (i32, i32) {
    %c0_i32 = arith.constant 0 : i32
    %c0_i32_0 = arith.constant 0 : i32
    return %arg0, %c0_i32 : i32, i32
  }
}

</mosaic_0001>

<llo_original>
// kernel: tpu_custom_call.1
$region0: #{tpu_custom_call.1}
  #allocation0 [shape = 'u32[]', space=smem, size = 0x4, offset = 0x4, fixed_abs, tag = 'smem constant byte address 0x4 - core index']
  #allocation1 [shape = 'u32[144,128]{1,0:T(1,128)}', space=vmem, size = 0x12000, scoped, tag = 'internal scratch']
  %s0 = inlined_call_operand.vmem [shape: f32[128,12], index: 0, kind: input, shape index: {}]
  %s1 = inlined_call_operand.vmem [shape: f32[128,16], index: 1, kind: input, shape index: {}]
  %s2 = inlined_call_operand.vmem [shape: f32[128,16], index: 2, kind: input, shape index: {}]
  %s3 = inlined_call_operand.vmem [shape: bf16[12,16], index: 3, kind: input, shape index: {}]
  %s4 = inlined_call_operand.vmem [shape: f32[128,16], index: 4, kind: output, shape index: {0}]
  %s5 = inlined_call_operand.vmem [shape: f32[128,16], index: 5, kind: output, shape index: {1}]
  %6 = xla_tuple %s4, %s5
  %s7 = sld [smem:[#allocation0]]
  $region57: #{tpu_custom_call.1} parent=0
    _
  %s9 = ssub.s32 1, %s7
  %s10 = scalar_select 0, %s9, %s7
  loop: start=0, step=1, limit=4
  $region2: #{tpu_custom_call.1} parent=0 // loop_pre_header
    _
  $region3: #{tpu_custom_call.1} parent=0 // loop_header
    %s12 = sphi 0, %s16
    %p13 = scmp.ge.s32.totalorder %s12, 4
    %s22 = sphi 0, %s24
    %s25 = sphi 0, %s22
    %s26 = sphi 0, %s25
    %s42 = sphi 0, %s26
    %s48 = sphi 0, %s50
    %s51 = sphi 0, %s48
    %s52 = sphi 0, %s51
    %s68 = sphi 0, %s52
    %s74 = sphi 0, %s76
    %s77 = sphi 0, %s74
    %s78 = sphi 0, %s77
    %s94 = sphi 0, %s78
    %s98 = sphi 0, %s98
    %s100 = sphi 0, %s98
    %s101 = sphi 0, %s100
    %s115 = sphi 0, %s101
    %s121 = sphi 0, %s123
    %s124 = sphi 0, %s121
    %s125 = sphi 0, %s124
    %s141 = sphi 0, %s125
    %s147 = sphi 0, %s149
    %s150 = sphi 0, %s147
    %s151 = sphi 0, %s150
    %s167 = sphi 0, %s151
  $region4: #{tpu_custom_call.1} parent=0 // loop_header_branch
    %15 = sbr.rel (%p13) target = $region8
  $region5: #{tpu_custom_call.1} parent=0 // loop_body
    %s17 = ssub.s32 %s12, 1
    %s18 = ssub.s32 %s12, 2
    %s19 = sadd.s32 %s12, 1
    %s20 = ssub.s32 %s12, %s19
    %p21 = scmp.eq.s32.totalorder %s20, 0
    %s23 = sadd.s32 %s22, 1
    %s24 = scalar_select %p21, %s22, %s23
    %p27 = pneg %p21
    %p28 = scmp.eq.s32.totalorder %s12, 1
    %p29 = por %p27, %p28
    %p30 = scmp.ne.s32.totalorder %s22, %s25
    %p31 = scmp.eq.s32.totalorder %s12, 0
    %p32 = por %p30, %p31
    %p33 = scmp.ne.s32.totalorder %s22, %s25
    %p34 = scmp.eq.s32.totalorder %s17, 1
    %p35 = por %p33, %p34
    %p36 = scmp.ne.s32.totalorder %s25, %s26
    %p37 = scmp.eq.s32.totalorder %s17, 0
    %p38 = por %p36, %p37
    %p39 = scmp.ne.s32.totalorder %s25, %s26
    %p40 = scmp.eq.s32.totalorder %s18, 1
    %p41 = por %p39, %p40
    %p43 = scmp.ne.s32.totalorder %s26, %s42
    %p44 = scmp.eq.s32.totalorder %s18, 0
    %p45 = por %p43, %p44
    %s46 = ssub.s32 %s12, %s19
    %p47 = scmp.eq.s32.totalorder %s46, 0
    %s49 = sadd.s32 %s48, 1
    %s50 = scalar_select %p47, %s48, %s49
    %p53 = pneg %p47
    %p54 = scmp.eq.s32.totalorder %s12, 1
    %p55 = por %p53, %p54
    %p56 = scmp.ne.s32.totalorder %s48, %s51
    %p57 = scmp.eq.s32.totalorder %s12, 0
    %p58 = por %p56, %p57
    %p59 = scmp.ne.s32.totalorder %s48, %s51
    %p60 = scmp.eq.s32.totalorder %s17, 1
    %p61 = por %p59, %p60
    %p62 = scmp.ne.s32.totalorder %s51, %s52
    %p63 = scmp.eq.s32.totalorder %s17, 0
    %p64 = por %p62, %p63
    %p65 = scmp.ne.s32.totalorder %s51, %s52
    %p66 = scmp.eq.s32.totalorder %s18, 1
    %p67 = por %p65, %p66
    %p69 = scmp.ne.s32.totalorder %s52, %s68
    %p70 = scmp.eq.s32.totalorder %s18, 0
    %p71 = por %p69, %p70
    %s72 = ssub.s32 %s12, %s19
    %p73 = scmp.eq.s32.totalorder %s72, 0
    %s75 = sadd.s32 %s74, 1
    %s76 = scalar_select %p73, %s74, %s75
    %p79 = pneg %p73
    %p80 = scmp.eq.s32.totalorder %s12, 1
    %p81 = por %p79, %p80
    %p82 = scmp.ne.s32.totalorder %s74, %s77
    %p83 = scmp.eq.s32.totalorder %s12, 0
    %p84 = por %p82, %p83
    %p85 = scmp.ne.s32.totalorder %s74, %s77
    %p86 = scmp.eq.s32.totalorder %s17, 1
    %p87 = por %p85, %p86
    %p88 = scmp.ne.s32.totalorder %s77, %s78
    %p89 = scmp.eq.s32.totalorder %s17, 0
    %p90 = por %p88, %p89
    %p91 = scmp.ne.s32.totalorder %s77, %s78
    %p92 = scmp.eq.s32.totalorder %s18, 1
    %p93 = por %p91, %p92
    %p95 = scmp.ne.s32.totalorder %s78, %s94
    %p96 = scmp.eq.s32.totalorder %s18, 0
    %p97 = por %p95, %p96
    %s99 = sadd.s32 %s98, 1
    %p102 = scmp.eq.s32.totalorder %s12, 1
    %p103 = scmp.ne.s32.totalorder %s98, %s100
    %p104 = scmp.eq.s32.totalorder %s12, 0
    %p105 = por %p103, %p104
    %p106 = scmp.ne.s32.totalorder %s98, %s100
    %p107 = scmp.eq.s32.totalorder %s17, 1
    %p108 = por %p106, %p107
    %p109 = scmp.ne.s32.totalorder %s100, %s101
    %p110 = scmp.eq.s32.totalorder %s17, 0
    %p111 = por %p109, %p110
    %p112 = scmp.ne.s32.totalorder %s100, %s101
    %p113 = scmp.eq.s32.totalorder %s18, 1
    %p114 = por %p112, %p113
    %p116 = scmp.ne.s32.totalorder %s101, %s115
    %p117 = scmp.eq.s32.totalorder %s18, 0
    %p118 = por %p116, %p117
    %s119 = ssub.s32 %s12, %s19
    %p120 = scmp.eq.s32.totalorder %s119, 0
    %s122 = sadd.s32 %s121, 1
    %s123 = scalar_select %p120, %s121, %s122
    %p126 = pneg %p120
    %p127 = scmp.eq.s32.totalorder %s12, 1
    %p128 = por %p126, %p127
    %p129 = scmp.ne.s32.totalorder %s121, %s124
    %p130 = scmp.eq.s32.totalorder %s12, 0
    %p131 = por %p129, %p130
    %p132 = scmp.ne.s32.totalorder %s121, %s124
    %p133 = scmp.eq.s32.totalorder %s17, 1
    %p134 = por %p132, %p133
    %p135 = scmp.ne.s32.totalorder %s124, %s125
    %p136 = scmp.eq.s32.totalorder %s17, 0
    %p137 = por %p135, %p136
    %p138 = scmp.ne.s32.totalorder %s124, %s125
    %p139 = scmp.eq.s32.totalorder %s18, 1
    %p140 = por %p138, %p139
    %p142 = scmp.ne.s32.totalorder %s125, %s141
    %p143 = scmp.eq.s32.totalorder %s18, 0
    %p144 = por %p142, %p143
    %s145 = ssub.s32 %s12, %s19
    %p146 = scmp.eq.s32.totalorder %s145, 0
    %s148 = sadd.s32 %s147, 1
    %s149 = scalar_select %p146, %s147, %s148
    %p152 = pneg %p146
    %p153 = scmp.eq.s32.totalorder %s12, 1
    %p154 = por %p152, %p153
    %p155 = scmp.ne.s32.totalorder %s147, %s150
    %p156 = scmp.eq.s32.totalorder %s12, 0
    %p157 = por %p155, %p156
    %p158 = scmp.ne.s32.totalorder %s147, %s150
    %p159 = scmp.eq.s32.totalorder %s17, 1
    %p160 = por %p158, %p159
    %p161 = scmp.ne.s32.totalorder %s150, %s151
    %p162 = scmp.eq.s32.totalorder %s17, 0
    %p163 = por %p161, %p162
    %p164 = scmp.ne.s32.totalorder %s150, %s151
    %p165 = scmp.eq.s32.totalorder %s18, 1
    %p166 = por %p164, %p165
    %p168 = scmp.ne.s32.totalorder %s151, %s167
    %p169 = scmp.eq.s32.totalorder %s18, 0
    %p170 = por %p168, %p169
    %p171 = scmp.le.s32.totalorder 1, %s12
    %p172 = scmp.lt.s32.totalorder %s12, 3
    %p173 = pnand %p171, %p172
    %p174 = pneg %p173
    // Predicated region
    $region9: #{tpu_custom_call.1} parent=5 // pred_check
      _
    $region10: #{tpu_custom_call.1} parent=5 // pred_check_branch
      %176 = sbr.rel (%p173) target = $region12
    $region11: #{tpu_custom_call.1} parent=5 // pred_region
      %s177 = ssub.s32 %s12, 1
      // Predicated region
      $region13: #{tpu_custom_call.1} parent=11 // pred_check
        %p178 = pneg %p111
      $region14: #{tpu_custom_call.1} parent=11 // pred_check_branch
        %180 = sbr.rel (%p178) target = $region16
      $region15: #{tpu_custom_call.1} parent=11 // pred_region
        _
      $region16: #{tpu_custom_call.1} parent=11 // pred_fallthru
        _
    $region12: #{tpu_custom_call.1} parent=5 // pred_fallthru
      _
    %p181 = scmp.lt.s32.totalorder %s12, 2
    // Predicated region
    $region17: #{tpu_custom_call.1} parent=5 // pred_check
      %p182 = pneg %p181
    $region18: #{tpu_custom_call.1} parent=5 // pred_check_branch
      %184 = sbr.rel (%p182) target = $region20
    $region19: #{tpu_custom_call.1} parent=5 // pred_region
      // Predicated region
      $region21: #{tpu_custom_call.1} parent=19 // pred_check
        %p185 = pneg %p32
      $region22: #{tpu_custom_call.1} parent=19 // pred_check_branch
        %187 = sbr.rel (%p185) target = $region24
      $region23: #{tpu_custom_call.1} parent=19 // pred_region
        %s188 = smul.u32 8, %s12
        %p189 = scmp.lt.s32.totalorder %s188, 15
        %s190 = scalar_select %p189, %s188, 15
        %s191 = smul.addr %s190, 8
        %s192 = scalar_lea.vmem %s0, %s191
        %s193 = smul.u32 8, %s12
      $region24: #{tpu_custom_call.1} parent=19 // pred_fallthru
        _
      // Predicated region
      $region25: #{tpu_custom_call.1} parent=19 // pred_check
        %p194 = pneg %p58
      $region26: #{tpu_custom_call.1} parent=19 // pred_check_branch
        %196 = sbr.rel (%p194) target = $region28
      $region27: #{tpu_custom_call.1} parent=19 // pred_region
        %s197 = smul.u32 8, %s12
        %p198 = scmp.lt.s32.totalorder %s197, 15
        %s199 = scalar_select %p198, %s197, 15
        %s200 = smul.addr %s199, 8
        %s201 = scalar_lea.vmem %s1, %s200
        %s202 = smul.u32 8, %s12
      $region28: #{tpu_custom_call.1} parent=19 // pred_fallthru
        _
      // Predicated region
      $region29: #{tpu_custom_call.1} parent=19 // pred_check
        %p203 = pneg %p84
      $region30: #{tpu_custom_call.1} parent=19 // pred_check_branch
        %205 = sbr.rel (%p203) target = $region32
      $region31: #{tpu_custom_call.1} parent=19 // pred_region
        %s206 = smul.u32 8, %s12
        %p207 = scmp.lt.s32.totalorder %s206, 15
        %s208 = scalar_select %p207, %s206, 15
        %s209 = smul.addr %s208, 8
        %s210 = scalar_lea.vmem %s2, %s209
        %s211 = smul.u32 8, %s12
      $region32: #{tpu_custom_call.1} parent=19 // pred_fallthru
        _
    $region20: #{tpu_custom_call.1} parent=5 // pred_fallthru
      _
    %p212 = scmp.le.s32.totalorder 1, %s12
    %p213 = scmp.lt.s32.totalorder %s12, 3
    %p214 = pnand %p212, %p213
    %p215 = pneg %p214
    // Predicated region
    $region33: #{tpu_custom_call.1} parent=5 // pred_check
      _
    $region34: #{tpu_custom_call.1} parent=5 // pred_check_branch
      %217 = sbr.rel (%p214) target = $region36
    $region35: #{tpu_custom_call.1} parent=5 // pred_region
      %s218 = ssub.s32 %s12, 1
      %s219 = smul.u32 8, %s17
      %p220 = scmp.lt.s32.totalorder %s219, 15
      %s221 = scalar_select %p220, %s219, 15
      %s222 = smul.addr %s221, 8
      %s223 = scalar_lea.vmem %s0, %s222
      %p224 = pneg %p38
      %p225 = pneg %p35
      %s226 = smul.u32 8, %s17
      %p227 = scmp.lt.s32.totalorder %s226, 15
      %s228 = scalar_select %p227, %s226, 15
      %s229 = smul.addr %s228, 8
      %s230 = scalar_lea.vmem %s1, %s229
      %p231 = pneg %p64
      %p232 = pneg %p61
      %s233 = smul.u32 8, %s17
      %p234 = scmp.lt.s32.totalorder %s233, 15
      %s235 = scalar_select %p234, %s233, 15
      %s236 = smul.addr %s235, 8
      %s237 = scalar_lea.vmem %s2, %s236
      %p238 = pneg %p90
      %p239 = pneg %p87
      %p240 = pneg %p111
      %p241 = pneg %p108
      %p242 = pneg %p137
      %p243 = pneg %p134
      %s244 = smul.u32 8, %s17
      %p245 = scmp.lt.s32.totalorder %s244, 15
      %s246 = scalar_select %p245, %s244, 15
      %s247 = smul.addr %s246, 8
      %s248 = scalar_lea.vmem %s4, %s247
      %p249 = pneg %p163
      %p250 = pneg %p160
      %s251 = smul.u32 8, %s17
      %p252 = scmp.lt.s32.totalorder %s251, 15
      %s253 = scalar_select %p252, %s251, 15
      %s254 = smul.addr %s253, 8
      %s255 = scalar_lea.vmem %s5, %s254
      %s256 = smul.u32 8, %s17
      %p257 = scmp.lt.s32.totalorder %s256, 15
      %s258 = scalar_select %p257, %s256, 15
      %s259 = smul.addr %s258, 8
      %s260 = scalar_lea.vmem %s0, %s259
      %s261 = smul.u32 8, %s17
      %s262 = smul.u32 8, %s17
      %p263 = scmp.lt.s32.totalorder %s262, 15
      %s264 = scalar_select %p263, %s262, 15
      %s265 = smul.addr %s264, 8
      %s266 = scalar_lea.vmem %s1, %s265
      %s267 = smul.u32 8, %s17
      %s268 = smul.u32 8, %s17
      %p269 = scmp.lt.s32.totalorder %s268, 15
      %s270 = scalar_select %p269, %s268, 15
      %s271 = smul.addr %s270, 8
      %s272 = scalar_lea.vmem %s2, %s271
      %s273 = smul.u32 8, %s17
      %s274 = smul.u32 8, %s17
      %p275 = scmp.lt.s32.totalorder %s274, 15
      %s276 = scalar_select %p275, %s274, 15
      %s277 = smul.addr %s276, 8
      %s278 = scalar_lea.vmem %s4, %s277
      %s279 = smul.u32 8, %s17
      %s280 = smul.u32 8, %s17
      %p281 = scmp.lt.s32.totalorder %s280, 15
      %s282 = scalar_select %p281, %s280, 15
      %s283 = smul.addr %s282, 8
      %s284 = scalar_lea.vmem %s5, %s283
      %s285 = smul.u32 8, %s17
      %v287 = vld [vmem:[%s260] sm:$0xff]
      %v288 = vld [vmem:[%s260 + $0x8] sm:$0xff]
      %v289 = vld [vmem:[%s260 + $0x10] sm:$0xff]
      %v290 = vld [vmem:[%s260 + $0x18] sm:$0xff]
      %v291 = vld [vmem:[%s260 + $0x20] sm:$0xff]
      %v292 = vld [vmem:[%s260 + $0x28] sm:$0xff]
      %v293 = vld [vmem:[%s260 + $0x30] sm:$0xff]
      %v294 = vld [vmem:[%s260 + $0x38] sm:$0xff]
      %v295 = vlaneseq
      %v296 = vand.u32 %v295, 127
      %vm297 = vcmask 97280
      %v298 = vsel %vm297, %v287, -inf
      %299 = vmax.xlane.f32.xlu0 %v298
      %v300 = vpop.xlane.xlu0 %299
      %v301 = vsel %vm297, %v288, -inf
      %302 = vmax.xlane.f32.xlu0 %v301
      %v303 = vpop.xlane.xlu0 %302
      %v304 = vsel %vm297, %v289, -inf
      %305 = vmax.xlane.f32.xlu0 %v304
      %v306 = vpop.xlane.xlu0 %305
      %v307 = vsel %vm297, %v290, -inf
      %308 = vmax.xlane.f32.xlu0 %v307
      %v309 = vpop.xlane.xlu0 %308
      %v310 = vsel %vm297, %v291, -inf
      %311 = vmax.xlane.f32.xlu0 %v310
      %v312 = vpop.xlane.xlu0 %311
      %v313 = vsel %vm297, %v292, -inf
      %314 = vmax.xlane.f32.xlu0 %v313
      %v315 = vpop.xlane.xlu0 %314
      %v316 = vsel %vm297, %v293, -inf
      %317 = vmax.xlane.f32.xlu0 %v316
      %v318 = vpop.xlane.xlu0 %317
      %v319 = vsel %vm297, %v294, -inf
      %320 = vmax.xlane.f32.xlu0 %v319
      %v321 = vpop.xlane.xlu0 %320
      %v322 = vsub.f32 %v287, %v300
      %v323 = vsub.f32 %v288, %v303
      %v324 = vsub.f32 %v289, %v306
      %v325 = vsub.f32 %v290, %v309
      %v326 = vsub.f32 %v291, %v312
      %v327 = vsub.f32 %v292, %v315
      %v328 = vsub.f32 %v293, %v318
      %v329 = vsub.f32 %v294, %v321
      %v330 = vmul.f32 %v322, 1.442695
      %v331 = vpow.pop %v330
      %v332 = vmul.f32 %v323, 1.442695
      %v333 = vpow.pop %v332
      %v334 = vmul.f32 %v324, 1.442695
      %v335 = vpow.pop %v334
      %v336 = vmul.f32 %v325, 1.442695
      %v337 = vpow.pop %v336
      %v338 = vmul.f32 %v326, 1.442695
      %v339 = vpow.pop %v338
      %v340 = vmul.f32 %v327, 1.442695
      %v341 = vpow.pop %v340
      %v342 = vmul.f32 %v328, 1.442695
      %v343 = vpow.pop %v342
      %v344 = vmul.f32 %v329, 1.442695
      %v345 = vpow.pop %v344
      %v346 = vsel %vm297, %v331, 0.0
      %347 = vadd.xlane.f32.xlu0 %v346
      %v348 = vpop.xlane.xlu0 %347
      %v349 = vsel %vm297, %v333, 0.0
      %350 = vadd.xlane.f32.xlu0 %v349
      %v351 = vpop.xlane.xlu0 %350
      %v352 = vsel %vm297, %v335, 0.0
      %353 = vadd.xlane.f32.xlu0 %v352
      %v354 = vpop.xlane.xlu0 %353
      %v355 = vsel %vm297, %v337, 0.0
      %356 = vadd.xlane.f32.xlu0 %v355
      %v357 = vpop.xlane.xlu0 %356
      %v358 = vsel %vm297, %v339, 0.0
      %359 = vadd.xlane.f32.xlu0 %v358
      %v360 = vpop.xlane.xlu0 %359
      %v361 = vsel %vm297, %v341, 0.0
      %362 = vadd.xlane.f32.xlu0 %v361
      %v363 = vpop.xlane.xlu0 %362
      %v364 = vsel %vm297, %v343, 0.0
      %365 = vadd.xlane.f32.xlu0 %v364
      %v366 = vpop.xlane.xlu0 %365
      %v367 = vsel %vm297, %v345, 0.0
      %368 = vadd.xlane.f32.xlu0 %v367
      %v369 = vpop.xlane.xlu0 %368
      %vm370 = vcmp.lt.s32.totalorder %v296, 11
      %v371 = vsel %vm370, %v287, -inf
      %v372 = vsel %vm370, %v288, -inf
      %v373 = vsel %vm370, %v289, -inf
      %v374 = vsel %vm370, %v290, -inf
      %v375 = vsel %vm370, %v291, -inf
      %v376 = vsel %vm370, %v292, -inf
      %v377 = vsel %vm370, %v293, -inf
      %v378 = vsel %vm370, %v294, -inf
      %v379 = vsel %vm297, %v371, -inf
      %380 = vmax.xlane.f32.xlu0 %v379
      %v381 = vpop.xlane.xlu0 %380
      %v382 = vsel %vm297, %v372, -inf
      %383 = vmax.xlane.f32.xlu0 %v382
      %v384 = vpop.xlane.xlu0 %383
      %v385 = vsel %vm297, %v373, -inf
      %386 = vmax.xlane.f32.xlu0 %v385
      %v387 = vpop.xlane.xlu0 %386
      %v388 = vsel %vm297, %v374, -inf
      %389 = vmax.xlane.f32.xlu0 %v388
      %v390 = vpop.xlane.xlu0 %389
      %v391 = vsel %vm297, %v375, -inf
      %392 = vmax.xlane.f32.xlu0 %v391
      %v393 = vpop.xlane.xlu0 %392
      %v394 = vsel %vm297, %v376, -inf
      %395 = vmax.xlane.f32.xlu0 %v394
      %v396 = vpop.xlane.xlu0 %395
      %v397 = vsel %vm297, %v377, -inf
      %398 = vmax.xlane.f32.xlu0 %v397
      %v399 = vpop.xlane.xlu0 %398
      %v400 = vsel %vm297, %v378, -inf
      %401 = vmax.xlane.f32.xlu0 %v400
      %v402 = vpop.xlane.xlu0 %401
      %v403 = vsub.f32 %v381, %v300
      %v404 = vsub.f32 %v384, %v303
      %v405 = vsub.f32 %v387, %v306
      %v406 = vsub.f32 %v390, %v309
      %v407 = vsub.f32 %v393, %v312
      %v408 = vsub.f32 %v396, %v315
      %v409 = vsub.f32 %v399, %v318
      %v410 = vsub.f32 %v402, %v321
      %v411 = vmul.f32 %v403, 1.442695
      %v412 = vpow.pop %v411
      %v413 = vmul.f32 %v404, 1.442695
      %v414 = vpow.pop %v413
      %v415 = vmul.f32 %v405, 1.442695
      %v416 = vpow.pop %v415
      %v417 = vmul.f32 %v406, 1.442695
      %v418 = vpow.pop %v417
      %v419 = vmul.f32 %v407, 1.442695
      %v420 = vpow.pop %v419
      %v421 = vmul.f32 %v408, 1.442695
      %v422 = vpow.pop %v421
      %v423 = vmul.f32 %v409, 1.442695
      %v424 = vpow.pop %v423
      %v425 = vmul.f32 %v410, 1.442695
      %v426 = vpow.pop %v425
      %v427 = vrcp.pop %v348
      %v428 = vrcp.pop %v351
      %v429 = vrcp.pop %v354
      %v430 = vrcp.pop %v357
      %v431 = vrcp.pop %v360
      %v432 = vrcp.pop %v363
      %v433 = vrcp.pop %v366
      %v434 = vrcp.pop %v369
      %v435 = vmul.f32 %v412, %v427
      %v436 = vmul.f32 %v414, %v428
      %v437 = vmul.f32 %v416, %v429
      %v438 = vmul.f32 %v418, %v430
      %v439 = vmul.f32 %v420, %v431
      %v440 = vmul.f32 %v422, %v432
      %v441 = vmul.f32 %v424, %v433
      %v442 = vmul.f32 %v426, %v434
      %vm443 = vcmp.eq.f32.partialorder %v371, %v381
      %vm444 = vcmp.eq.f32.partialorder %v372, %v384
      %vm445 = vcmp.eq.f32.partialorder %v373, %v387
      %vm446 = vcmp.eq.f32.partialorder %v374, %v390
      %vm447 = vcmp.eq.f32.partialorder %v375, %v393
      %vm448 = vcmp.eq.f32.partialorder %v376, %v396
      %vm449 = vcmp.eq.f32.partialorder %v377, %v399
      %vm450 = vcmp.eq.f32.partialorder %v378, %v402
      %v451 = vsel %vm443, %v296, 12
      %v452 = vsel %vm444, %v296, 12
      %v453 = vsel %vm445, %v296, 12
      %v454 = vsel %vm446, %v296, 12
      %v455 = vsel %vm447, %v296, 12
      %v456 = vsel %vm448, %v296, 12
      %v457 = vsel %vm449, %v296, 12
      %v458 = vsel %vm450, %v296, 12
      %v459 = vsel %vm297, %v451, 2147483647
      %v460 = vand.u32 %v459, 65535
      %v461 = vshra.s32 %v459, 16
      %v462 = vcvt.s32.f32 %v460
      %v463 = vcvt.s32.f32 %v461
      %464 = vmin.xlane.f32.xlu0 %v463
      %v465 = vpop.xlane.xlu0 %464
      %vm466 = vcmp.eq.f32.partialorder %v463, %v465
      %v467 = vsel %vm466, %v462, inf
      %468 = vmin.xlane.f32.xlu0 %v467
      %v469 = vpop.xlane.xlu0 %468
      %v470 = vcvt.f32.s32 %v469
      %v471 = vcvt.f32.s32 %v465
      %v472 = vshll.u32 %v471, 16
      %v473 = vadd.s32 %v472, %v470
      %v474 = vsel %vm297, %v452, 2147483647
      %v475 = vand.u32 %v474, 65535
      %v476 = vshra.s32 %v474, 16
      %v477 = vcvt.s32.f32 %v475
      %v478 = vcvt.s32.f32 %v476
      %479 = vmin.xlane.f32.xlu0 %v478
      %v480 = vpop.xlane.xlu0 %479
      %vm481 = vcmp.eq.f32.partialorder %v478, %v480
      %v482 = vsel %vm481, %v477, inf
      %483 = vmin.xlane.f32.xlu0 %v482
      %v484 = vpop.xlane.xlu0 %483
      %v485 = vcvt.f32.s32 %v484
      %v486 = vcvt.f32.s32 %v480
      %v487 = vshll.u32 %v486, 16
      %v488 = vadd.s32 %v487, %v485
      %v489 = vsel %vm297, %v453, 2147483647
      %v490 = vand.u32 %v489, 65535
      %v491 = vshra.s32 %v489, 16
      %v492 = vcvt.s32.f32 %v490
      %v493 = vcvt.s32.f32 %v491
      %494 = vmin.xlane.f32.xlu0 %v493
      %v495 = vpop.xlane.xlu0 %494
      %vm496 = vcmp.eq.f32.partialorder %v493, %v495
      %v497 = vsel %vm496, %v492, inf
      %498 = vmin.xlane.f32.xlu0 %v497
      %v499 = vpop.xlane.xlu0 %498
      %v500 = vcvt.f32.s32 %v499
      %v501 = vcvt.f32.s32 %v495
      %v502 = vshll.u32 %v501, 16
      %v503 = vadd.s32 %v502, %v500
      %v504 = vsel %vm297, %v454, 2147483647
      %v505 = vand.u32 %v504, 65535
      %v506 = vshra.s32 %v504, 16
      %v507 = vcvt.s32.f32 %v505
      %v508 = vcvt.s32.f32 %v506
      %509 = vmin.xlane.f32.xlu0 %v508
      %v510 = vpop.xlane.xlu0 %509
      %vm511 = vcmp.eq.f32.partialorder %v508, %v510
      %v512 = vsel %vm511, %v507, inf
      %513 = vmin.xlane.f32.xlu0 %v512
      %v514 = vpop.xlane.xlu0 %513
      %v515 = vcvt.f32.s32 %v514
      %v516 = vcvt.f32.s32 %v510
      %v517 = vshll.u32 %v516, 16
      %v518 = vadd.s32 %v517, %v515
      %v519 = vsel %vm297, %v455, 2147483647
      %v520 = vand.u32 %v519, 65535
      %v521 = vshra.s32 %v519, 16
      %v522 = vcvt.s32.f32 %v520
      %v523 = vcvt.s32.f32 %v521
      %524 = vmin.xlane.f32.xlu0 %v523
      %v525 = vpop.xlane.xlu0 %524
      %vm526 = vcmp.eq.f32.partialorder %v523, %v525
      %v527 = vsel %vm526, %v522, inf
      %528 = vmin.xlane.f32.xlu0 %v527
      %v529 = vpop.xlane.xlu0 %528
      %v530 = vcvt.f32.s32 %v529
      %v531 = vcvt.f32.s32 %v525
      %v532 = vshll.u32 %v531, 16
      %v533 = vadd.s32 %v532, %v530
      %v534 = vsel %vm297, %v456, 2147483647
      %v535 = vand.u32 %v534, 65535
      %v536 = vshra.s32 %v534, 16
      %v537 = vcvt.s32.f32 %v535
      %v538 = vcvt.s32.f32 %v536
      %539 = vmin.xlane.f32.xlu0 %v538
      %v540 = vpop.xlane.xlu0 %539
      %vm541 = vcmp.eq.f32.partialorder %v538, %v540
      %v542 = vsel %vm541, %v537, inf
      %543 = vmin.xlane.f32.xlu0 %v542
      %v544 = vpop.xlane.xlu0 %543
      %v545 = vcvt.f32.s32 %v544
      %v546 = vcvt.f32.s32 %v540
      %v547 = vshll.u32 %v546, 16
      %v548 = vadd.s32 %v547, %v545
      %v549 = vsel %vm297, %v457, 2147483647
      %v550 = vand.u32 %v549, 65535
      %v551 = vshra.s32 %v549, 16
      %v552 = vcvt.s32.f32 %v550
      %v553 = vcvt.s32.f32 %v551
      %554 = vmin.xlane.f32.xlu0 %v553
      %v555 = vpop.xlane.xlu0 %554
      %vm556 = vcmp.eq.f32.partialorder %v553, %v555
      %v557 = vsel %vm556, %v552, inf
      %558 = vmin.xlane.f32.xlu0 %v557
      %v559 = vpop.xlane.xlu0 %558
      %v560 = vcvt.f32.s32 %v559
      %v561 = vcvt.f32.s32 %v555
      %v562 = vshll.u32 %v561, 16
      %v563 = vadd.s32 %v562, %v560
      %v564 = vsel %vm297, %v458, 2147483647
      %v565 = vand.u32 %v564, 65535
      %v566 = vshra.s32 %v564, 16
      %v567 = vcvt.s32.f32 %v565
      %v568 = vcvt.s32.f32 %v566
      %569 = vmin.xlane.f32.xlu0 %v568
      %v570 = vpop.xlane.xlu0 %569
      %vm571 = vcmp.eq.f32.partialorder %v568, %v570
      %v572 = vsel %vm571, %v567, inf
      %573 = vmin.xlane.f32.xlu0 %v572
      %v574 = vpop.xlane.xlu0 %573
      %v575 = vcvt.f32.s32 %v574
      %v576 = vcvt.f32.s32 %v570
      %v577 = vshll.u32 %v576, 16
      %v578 = vadd.s32 %v577, %v575
      %vm579 = vcmp.eq.s32.totalorder %v473, %v296
      %vm580 = vcmp.eq.s32.totalorder %v488, %v296
      %vm581 = vcmp.eq.s32.totalorder %v503, %v296
      %vm582 = vcmp.eq.s32.totalorder %v518, %v296
      %vm583 = vcmp.eq.s32.totalorder %v533, %v296
      %vm584 = vcmp.eq.s32.totalorder %v548, %v296
      %vm585 = vcmp.eq.s32.totalorder %v563, %v296
      %vm586 = vcmp.eq.s32.totalorder %v578, %v296
      %v587 = vsel %vm579, 1, 0
      %v588 = vsel %vm580, 1, 0
      %v589 = vsel %vm581, 1, 0
      %v590 = vsel %vm582, 1, 0
      %v591 = vsel %vm583, 1, 0
      %v592 = vsel %vm584, 1, 0
      %v593 = vsel %vm585, 1, 0
      %v594 = vsel %vm586, 1, 0
      %v595 = vcvt.s32.f32 %v587
      %v596 = vcvt.s32.f32 %v588
      %v597 = vcvt.s32.f32 %v589
      %v598 = vcvt.s32.f32 %v590
      %v599 = vcvt.s32.f32 %v591
      %v600 = vcvt.s32.f32 %v592
      %v601 = vcvt.s32.f32 %v593
      %v602 = vcvt.s32.f32 %v594
      %v603 = vpack.c.bf16 %v596, %v595
      %v604 = vpack.c.bf16 %v598, %v597
      %v605 = vpack.c.bf16 %v600, %v599
      %v606 = vpack.c.bf16 %v602, %v601
      %v607 = vld [vmem:[%s3] sm:$0xf]
      %v608 = vld [vmem:[%s3 + $0x4] sm:$0x3]
      %v611 = vunpack.c.l.b16 %v607
      %v612 = vunpack.c.l.b16 %v608
      %v613 = vpack.c.b16 %v612, %v611
      %v615 = vsel %vm297, %v603, 0
      %v618 = vsel %vm297, %v604, 0
      %v621 = vsel %vm297, %v605, 0
      %v624 = vsel %vm297, %v606, 0
      %vm626 = vcmask 1045504
      %v628 = vsel %vm626, %v613, 0
      %630 = vmatprep.subr.bf16.mxu0 0
      %631 = vmatpush1.bf16.msra.mxu0 %v628
      %632 = vmatprep.subr.bf16.mxu0 0
      %633 = vmatpush1.bf16.msra.mxu0 0
      %634 = vmatprep.subr.bf16.mxu0 0
      %635 = vmatpush1.bf16.msra.mxu0 0
      %636 = vmatprep.subr.bf16.mxu0 0
      %637 = vmatpush1.bf16.msra.mxu0 0
      %638 = vmatprep.subr.bf16.mxu0 0
      %639 = vmatpush1.bf16.msra.mxu0 0
      %640 = vmatprep.subr.bf16.mxu0 0
      %641 = vmatpush1.bf16.msra.mxu0 0
      %642 = vmatprep.subr.bf16.mxu0 0
      %643 = vmatpush1.bf16.msra.mxu0 0
      %644 = vmatprep.subr.bf16.mxu0 0
      %645 = vmatpush1.bf16.msra.mxu0 0
      %646 = vmatprep.subr.bf16.mxu0 0
      %647 = vmatpush1.bf16.msra.mxu0 0
      %648 = vmatprep.subr.bf16.mxu0 0
      %649 = vmatpush1.bf16.msra.mxu0 0
      %650 = vmatprep.subr.bf16.mxu0 0
      %651 = vmatpush1.bf16.msra.mxu0 0
      %652 = vmatprep.subr.bf16.mxu0 0
      %653 = vmatpush1.bf16.msra.mxu0 0
      %654 = vmatprep.subr.bf16.mxu0 0
      %655 = vmatpush1.bf16.msra.mxu0 0
      %656 = vmatprep.subr.bf16.mxu0 0
      %657 = vmatpush1.bf16.msra.mxu0 0
      %658 = vmatprep.subr.bf16.mxu0 0
      %659 = vmatpush1.bf16.msra.mxu0 0
      %660 = vmatprep.subr.bf16.mxu0 0
      %661 = vmatpush1.bf16.msra.mxu0 0
      %662 = vmatprep.mubr.bf16.mxu0 0
      %663 = vmatmul.mubr.bf16.gmra.mrb[0].mxu0 %v615
      %v664 = vpop.f32.mrb[0].mxu0
      %v665 = vadd.f32 0.0, %v664
      %v666 = vpop.f32.mrb[0].mxu0
      %v667 = vpop.f32.mrb[0].mxu0
      %v668 = vadd.f32 0.0, %v667
      %v669 = vpop.f32.mrb[0].mxu0
      %670 = vmatprep.mubr.bf16.mxu0 0
      %671 = vmatmul.mubr.bf16.gmra.mrb[0].mxu0 %v618
      %v672 = vpop.f32.mrb[0].mxu0
      %v673 = vadd.f32 0.0, %v672
      %v674 = vpop.f32.mrb[0].mxu0
      %v675 = vpop.f32.mrb[0].mxu0
      %v676 = vadd.f32 0.0, %v675
      %v677 = vpop.f32.mrb[0].mxu0
      %678 = vmatprep.mubr.bf16.mxu0 0
      %679 = vmatmul.mubr.bf16.gmra.mrb[0].mxu0 %v621
      %v680 = vpop.f32.mrb[0].mxu0
      %v681 = vadd.f32 0.0, %v680
      %v682 = vpop.f32.mrb[0].mxu0
      %v683 = vpop.f32.mrb[0].mxu0
      %v684 = vadd.f32 0.0, %v683
      %v685 = vpop.f32.mrb[0].mxu0
      %686 = vmatprep.mubr.bf16.mxu0 0
      %687 = vmatmul.mubr.bf16.gmra.mrb[0].mxu0 %v624
      %v688 = vpop.f32.mrb[0].mxu0
      %v689 = vadd.f32 0.0, %v688
      %v690 = vpop.f32.mrb[0].mxu0
      %v691 = vpop.f32.mrb[0].mxu0
      %v692 = vadd.f32 0.0, %v691
      %v693 = vpop.f32.mrb[0].mxu0
      %694 = vdwg.mxu0
      %v695 = vld [vmem:[%s272] sm:$0xff]
      %v696 = vld [vmem:[%s272 + $0x8] sm:$0xff]
      %v697 = vld [vmem:[%s272 + $0x10] sm:$0xff]
      %v698 = vld [vmem:[%s272 + $0x18] sm:$0xff]
      %v699 = vld [vmem:[%s272 + $0x20] sm:$0xff]
      %v700 = vld [vmem:[%s272 + $0x28] sm:$0xff]
      %v701 = vld [vmem:[%s272 + $0x30] sm:$0xff]
      %v702 = vld [vmem:[%s272 + $0x38] sm:$0xff]
      %v703 = vxor.u32 %v695, 2147483648
      %v704 = vxor.u32 %v696, 2147483648
      %v705 = vxor.u32 %v697, 2147483648
      %v706 = vxor.u32 %v698, 2147483648
      %v707 = vxor.u32 %v699, 2147483648
      %v708 = vxor.u32 %v700, 2147483648
      %v709 = vxor.u32 %v701, 2147483648
      %v710 = vxor.u32 %v702, 2147483648
      %v711 = vmul.f32 %v703, 1.442695
      %v712 = vpow.pop %v711
      %v713 = vmul.f32 %v704, 1.442695
      %v714 = vpow.pop %v713
      %v715 = vmul.f32 %v705, 1.442695
      %v716 = vpow.pop %v715
      %v717 = vmul.f32 %v706, 1.442695
      %v718 = vpow.pop %v717
      %v719 = vmul.f32 %v707, 1.442695
      %v720 = vpow.pop %v719
      %v721 = vmul.f32 %v708, 1.442695
      %v722 = vpow.pop %v721
      %v723 = vmul.f32 %v709, 1.442695
      %v724 = vpow.pop %v723
      %v725 = vmul.f32 %v710, 1.442695
      %v726 = vpow.pop %v725
      %v727 = vadd.f32 %v712, 1.0
      %v728 = vadd.f32 %v714, 1.0
      %v729 = vadd.f32 %v716, 1.0
      %v730 = vadd.f32 %v718, 1.0
      %v731 = vadd.f32 %v720, 1.0
      %v732 = vadd.f32 %v722, 1.0
      %v733 = vadd.f32 %v724, 1.0
      %v734 = vadd.f32 %v726, 1.0
      %v735 = vrcp.pop %v727
      %v736 = vmul.f32 1.0, %v735
      %v737 = vrcp.pop %v728
      %v738 = vmul.f32 1.0, %v737
      %v739 = vrcp.pop %v729
      %v740 = vmul.f32 1.0, %v739
      %v741 = vrcp.pop %v730
      %v742 = vmul.f32 1.0, %v741
      %v743 = vrcp.pop %v731
      %v744 = vmul.f32 1.0, %v743
      %v745 = vrcp.pop %v732
      %v746 = vmul.f32 1.0, %v745
      %v747 = vrcp.pop %v733
      %v748 = vmul.f32 1.0, %v747
      %v749 = vrcp.pop %v734
      %v750 = vmul.f32 1.0, %v749
      %v751 = vmul.f32 %v736, %v435
      %v752 = vmul.f32 %v738, %v436
      %v753 = vmul.f32 %v740, %v437
      %v754 = vmul.f32 %v742, %v438
      %v755 = vmul.f32 %v744, %v439
      %v756 = vmul.f32 %v746, %v440
      %v757 = vmul.f32 %v748, %v441
      %v758 = vmul.f32 %v750, %v442
      %v759 = vld [vmem:[%s266] sm:$0xff]
      %v760 = vld [vmem:[%s266 + $0x8] sm:$0xff]
      %v761 = vld [vmem:[%s266 + $0x10] sm:$0xff]
      %v762 = vld [vmem:[%s266 + $0x18] sm:$0xff]
      %v763 = vld [vmem:[%s266 + $0x20] sm:$0xff]
      %v764 = vld [vmem:[%s266 + $0x28] sm:$0xff]
      %v765 = vld [vmem:[%s266 + $0x30] sm:$0xff]
      %v766 = vld [vmem:[%s266 + $0x38] sm:$0xff]
      %v767 = vxor.u32 %v759, 2147483648
      %v768 = vxor.u32 %v760, 2147483648
      %v769 = vxor.u32 %v761, 2147483648
      %v770 = vxor.u32 %v762, 2147483648
      %v771 = vxor.u32 %v763, 2147483648
      %v772 = vxor.u32 %v764, 2147483648
      %v773 = vxor.u32 %v765, 2147483648
      %v774 = vxor.u32 %v766, 2147483648
      %v775 = vmul.f32 %v767, 1.442695
      %v776 = vpow.pop %v775
      %v777 = vmul.f32 %v768, 1.442695
      %v778 = vpow.pop %v777
      %v779 = vmul.f32 %v769, 1.442695
      %v780 = vpow.pop %v779
      %v781 = vmul.f32 %v770, 1.442695
      %v782 = vpow.pop %v781
      %v783 = vmul.f32 %v771, 1.442695
      %v784 = vpow.pop %v783
      %v785 = vmul.f32 %v772, 1.442695
      %v786 = vpow.pop %v785
      %v787 = vmul.f32 %v773, 1.442695
      %v788 = vpow.pop %v787
      %v789 = vmul.f32 %v774, 1.442695
      %v790 = vpow.pop %v789
      %v791 = vadd.f32 %v776, 1.0
      %v792 = vadd.f32 %v778, 1.0
      %v793 = vadd.f32 %v780, 1.0
      %v794 = vadd.f32 %v782, 1.0
      %v795 = vadd.f32 %v784, 1.0
      %v796 = vadd.f32 %v786, 1.0
      %v797 = vadd.f32 %v788, 1.0
      %v798 = vadd.f32 %v790, 1.0
      %v799 = vrcp.pop %v791
      %v800 = vmul.f32 1.0, %v799
      %v801 = vrcp.pop %v792
      %v802 = vmul.f32 1.0, %v801
      %v803 = vrcp.pop %v793
      %v804 = vmul.f32 1.0, %v803
      %v805 = vrcp.pop %v794
      %v806 = vmul.f32 1.0, %v805
      %v807 = vrcp.pop %v795
      %v808 = vmul.f32 1.0, %v807
      %v809 = vrcp.pop %v796
      %v810 = vmul.f32 1.0, %v809
      %v811 = vrcp.pop %v797
      %v812 = vmul.f32 1.0, %v811
      %v813 = vrcp.pop %v798
      %v814 = vmul.f32 1.0, %v813
      %v815 = vmul.f32 %v800, %v665
      %v816 = vmul.f32 %v802, %v668
      %v817 = vmul.f32 %v804, %v673
      %v818 = vmul.f32 %v806, %v676
      %v819 = vmul.f32 %v808, %v681
      %v820 = vmul.f32 %v810, %v684
      %v821 = vmul.f32 %v812, %v689
      %v822 = vmul.f32 %v814, %v692
      %824 = vset.pattern.permute.xlu0 12
      %825 = vperm.xlu0 %824, %v751
      %v826 = vpop.permute.xlu0 %825
      %829 = vset.pattern.permute.xlu0 12
      %830 = vperm.xlu0 %829, %v752
      %v831 = vpop.permute.xlu0 %830
      %834 = vset.pattern.permute.xlu0 12
      %835 = vperm.xlu0 %834, %v753
      %v836 = vpop.permute.xlu0 %835
      %839 = vset.pattern.permute.xlu0 12
      %840 = vperm.xlu0 %839, %v754
      %v841 = vpop.permute.xlu0 %840
      %844 = vset.pattern.permute.xlu0 12
      %845 = vperm.xlu0 %844, %v755
      %v846 = vpop.permute.xlu0 %845
      %849 = vset.pattern.permute.xlu0 12
      %850 = vperm.xlu0 %849, %v756
      %v851 = vpop.permute.xlu0 %850
      %854 = vset.pattern.permute.xlu0 12
      %855 = vperm.xlu0 %854, %v757
      %v856 = vpop.permute.xlu0 %855
      %859 = vset.pattern.permute.xlu0 12
      %860 = vperm.xlu0 %859, %v758
      %v861 = vpop.permute.xlu0 %860
      %v863 = vmul.f32 %v815, %v826
      %v864 = vmul.f32 %v816, %v831
      %v865 = vmul.f32 %v817, %v836
      %v866 = vmul.f32 %v818, %v841
      %v867 = vmul.f32 %v819, %v846
      %v868 = vmul.f32 %v820, %v851
      %v869 = vmul.f32 %v821, %v856
      %v870 = vmul.f32 %v822, %v861
      %vm871 = vcmask 130048
      %872 = vst.msk [vmem:[%s278] sm:$0xff] %vm871, %v863
      %873 = vst.msk [vmem:[%s278 + $0x8] sm:$0xff] %vm871, %v864
      %874 = vst.msk [vmem:[%s278 + $0x10] sm:$0xff] %vm871, %v865
      %875 = vst.msk [vmem:[%s278 + $0x18] sm:$0xff] %vm871, %v866
      %876 = vst.msk [vmem:[%s278 + $0x20] sm:$0xff] %vm871, %v867
      %877 = vst.msk [vmem:[%s278 + $0x28] sm:$0xff] %vm871, %v868
      %878 = vst.msk [vmem:[%s278 + $0x30] sm:$0xff] %vm871, %v869
      %879 = vst.msk [vmem:[%s278 + $0x38] sm:$0xff] %vm871, %v870
      %v880 = vld [vmem:[%s272] sm:$0xff]
      %v881 = vld [vmem:[%s272 + $0x8] sm:$0xff]
      %v882 = vld [vmem:[%s272 + $0x10] sm:$0xff]
      %v883 = vld [vmem:[%s272 + $0x18] sm:$0xff]
      %v884 = vld [vmem:[%s272 + $0x20] sm:$0xff]
      %v885 = vld [vmem:[%s272 + $0x28] sm:$0xff]
      %v886 = vld [vmem:[%s272 + $0x30] sm:$0xff]
      %v887 = vld [vmem:[%s272 + $0x38] sm:$0xff]
      %v888 = vmul.f32 %v880, 0.5
      %v889 = vmul.f32 %v881, 0.5
      %v890 = vmul.f32 %v882, 0.5
      %v891 = vmul.f32 %v883, 0.5
      %v892 = vmul.f32 %v884, 0.5
      %v893 = vmul.f32 %v885, 0.5
      %v894 = vmul.f32 %v886, 0.5
      %v895 = vmul.f32 %v887, 0.5
      %904 = vrot.lane.b32.xlu0 %v888, 124
      %v905 = vpop.permute.xlu0 %904
      %906 = vrot.lane.b32.xlu0 %v889, 124
      %v907 = vpop.permute.xlu0 %906
      %908 = vrot.lane.b32.xlu0 %v890, 124
      %v909 = vpop.permute.xlu0 %908
      %910 = vrot.lane.b32.xlu0 %v891, 124
      %v911 = vpop.permute.xlu0 %910
      %912 = vrot.lane.b32.xlu0 %v892, 124
      %v913 = vpop.permute.xlu0 %912
      %914 = vrot.lane.b32.xlu0 %v893, 124
      %v915 = vpop.permute.xlu0 %914
      %916 = vrot.lane.b32.xlu0 %v894, 124
      %v917 = vpop.permute.xlu0 %916
      %918 = vrot.lane.b32.xlu0 %v895, 124
      %v919 = vpop.permute.xlu0 %918
      %v928 = vsub.f32 %v880, %v905
      %v929 = vsub.f32 %v881, %v907
      %v930 = vsub.f32 %v882, %v909
      %v931 = vsub.f32 %v883, %v911
      %v932 = vsub.f32 %v884, %v913
      %v933 = vsub.f32 %v885, %v915
      %v934 = vsub.f32 %v886, %v917
      %v935 = vsub.f32 %v887, %v919
      %944 = vrot.lane.b32.xlu0 %v880, 120
      %v945 = vpop.permute.xlu0 %944
      %946 = vrot.lane.b32.xlu0 %v881, 120
      %v947 = vpop.permute.xlu0 %946
      %948 = vrot.lane.b32.xlu0 %v882, 120
      %v949 = vpop.permute.xlu0 %948
      %950 = vrot.lane.b32.xlu0 %v883, 120
      %v951 = vpop.permute.xlu0 %950
      %952 = vrot.lane.b32.xlu0 %v884, 120
      %v953 = vpop.permute.xlu0 %952
      %954 = vrot.lane.b32.xlu0 %v885, 120
      %v955 = vpop.permute.xlu0 %954
      %956 = vrot.lane.b32.xlu0 %v886, 120
      %v957 = vpop.permute.xlu0 %956
      %958 = vrot.lane.b32.xlu0 %v887, 120
      %v959 = vpop.permute.xlu0 %958
      %v968 = vmul.f32 %v928, %v945
      %v969 = vmul.f32 %v929, %v947
      %v970 = vmul.f32 %v930, %v949
      %v971 = vmul.f32 %v931, %v951
      %v972 = vmul.f32 %v932, %v953
      %v973 = vmul.f32 %v933, %v955
      %v974 = vmul.f32 %v934, %v957
      %v975 = vmul.f32 %v935, %v959
      %v976 = vadd.f32 %v880, %v905
      %v977 = vadd.f32 %v881, %v907
      %v978 = vadd.f32 %v882, %v909
      %v979 = vadd.f32 %v883, %v911
      %v980 = vadd.f32 %v884, %v913
      %v981 = vadd.f32 %v885, %v915
      %v982 = vadd.f32 %v886, %v917
      %v983 = vadd.f32 %v887, %v919
      %v984 = vmul.f32 %v976, %v945
      %v985 = vmul.f32 %v977, %v947
      %v986 = vmul.f32 %v978, %v949
      %v987 = vmul.f32 %v979, %v951
      %v988 = vmul.f32 %v980, %v953
      %v989 = vmul.f32 %v981, %v955
      %v990 = vmul.f32 %v982, %v957
      %v991 = vmul.f32 %v983, %v959
      %vm992 = vcmask 31744
      %993 = vst.msk [vmem:[%s284] sm:$0xff] %vm992, %v968
      %994 = vst.msk [vmem:[%s284 + $0x8] sm:$0xff] %vm992, %v969
      %995 = vst.msk [vmem:[%s284 + $0x10] sm:$0xff] %vm992, %v970
      %996 = vst.msk [vmem:[%s284 + $0x18] sm:$0xff] %vm992, %v971
      %997 = vst.msk [vmem:[%s284 + $0x20] sm:$0xff] %vm992, %v972
      %998 = vst.msk [vmem:[%s284 + $0x28] sm:$0xff] %vm992, %v973
      %999 = vst.msk [vmem:[%s284 + $0x30] sm:$0xff] %vm992, %v974
      %1000 = vst.msk [vmem:[%s284 + $0x38] sm:$0xff] %vm992, %v975
      %1009 = vrot.lane.b32.xlu0 %v984, 4
      %v1010 = vpop.permute.xlu0 %1009
      %1011 = vrot.lane.b32.xlu0 %v985, 4
      %v1012 = vpop.permute.xlu0 %1011
      %1013 = vrot.lane.b32.xlu0 %v986, 4
      %v1014 = vpop.permute.xlu0 %1013
      %1015 = vrot.lane.b32.xlu0 %v987, 4
      %v1016 = vpop.permute.xlu0 %1015
      %1017 = vrot.lane.b32.xlu0 %v988, 4
      %v1018 = vpop.permute.xlu0 %1017
      %1019 = vrot.lane.b32.xlu0 %v989, 4
      %v1020 = vpop.permute.xlu0 %1019
      %1021 = vrot.lane.b32.xlu0 %v990, 4
      %v1022 = vpop.permute.xlu0 %1021
      %1023 = vrot.lane.b32.xlu0 %v991, 4
      %v1024 = vpop.permute.xlu0 %1023
      %vm1033 = vcmask 64544
      %1034 = vst.msk [vmem:[%s284] sm:$0xff] %vm1033, %v1010
      %1035 = vst.msk [vmem:[%s284 + $0x8] sm:$0xff] %vm1033, %v1012
      %1036 = vst.msk [vmem:[%s284 + $0x10] sm:$0xff] %vm1033, %v1014
      %1037 = vst.msk [vmem:[%s284 + $0x18] sm:$0xff] %vm1033, %v1016
      %1038 = vst.msk [vmem:[%s284 + $0x20] sm:$0xff] %vm1033, %v1018
      %1039 = vst.msk [vmem:[%s284 + $0x28] sm:$0xff] %vm1033, %v1020
      %1040 = vst.msk [vmem:[%s284 + $0x30] sm:$0xff] %vm1033, %v1022
      %1041 = vst.msk [vmem:[%s284 + $0x38] sm:$0xff] %vm1033, %v1024
      %vm1042 = vcmask 72768
      %1043 = vst.msk [vmem:[%s284] sm:$0xff] %vm1042, %v435
      %1044 = vst.msk [vmem:[%s284 + $0x8] sm:$0xff] %vm1042, %v436
      %1045 = vst.msk [vmem:[%s284 + $0x10] sm:$0xff] %vm1042, %v437
      %1046 = vst.msk [vmem:[%s284 + $0x18] sm:$0xff] %vm1042, %v438
      %1047 = vst.msk [vmem:[%s284 + $0x20] sm:$0xff] %vm1042, %v439
      %1048 = vst.msk [vmem:[%s284 + $0x28] sm:$0xff] %vm1042, %v440
      %1049 = vst.msk [vmem:[%s284 + $0x30] sm:$0xff] %vm1042, %v441
      %1050 = vst.msk [vmem:[%s284 + $0x38] sm:$0xff] %vm1042, %v442
      %v1051 = vcvt.s32.f32 %v473
      %v1052 = vcvt.s32.f32 %v488
      %v1053 = vcvt.s32.f32 %v503
      %v1054 = vcvt.s32.f32 %v518
      %v1055 = vcvt.s32.f32 %v533
      %v1056 = vcvt.s32.f32 %v548
      %v1057 = vcvt.s32.f32 %v563
      %v1058 = vcvt.s32.f32 %v578
      %vm1059 = vcmask 80968
      %1060 = vst.msk [vmem:[%s284] sm:$0xff] %vm1059, %v1051
      %1061 = vst.msk [vmem:[%s284 + $0x8] sm:$0xff] %vm1059, %v1052
      %1062 = vst.msk [vmem:[%s284 + $0x10] sm:$0xff] %vm1059, %v1053
      %1063 = vst.msk [vmem:[%s284 + $0x18] sm:$0xff] %vm1059, %v1054
      %1064 = vst.msk [vmem:[%s284 + $0x20] sm:$0xff] %vm1059, %v1055
      %1065 = vst.msk [vmem:[%s284 + $0x28] sm:$0xff] %vm1059, %v1056
      %1066 = vst.msk [vmem:[%s284 + $0x30] sm:$0xff] %vm1059, %v1057
      %1067 = vst.msk [vmem:[%s284 + $0x38] sm:$0xff] %vm1059, %v1058
      %vm1068 = vcmask 130128
      %1069 = vst.msk [vmem:[%s284] sm:$0xff] %vm1068, 0.0
      %1070 = vst.msk [vmem:[%s284 + $0x8] sm:$0xff] %vm1068, 0.0
      %1071 = vst.msk [vmem:[%s284 + $0x10] sm:$0xff] %vm1068, 0.0
      %1072 = vst.msk [vmem:[%s284 + $0x18] sm:$0xff] %vm1068, 0.0
      %1073 = vst.msk [vmem:[%s284 + $0x20] sm:$0xff] %vm1068, 0.0
      %1074 = vst.msk [vmem:[%s284 + $0x28] sm:$0xff] %vm1068, 0.0
      %1075 = vst.msk [vmem:[%s284 + $0x30] sm:$0xff] %vm1068, 0.0
      %1076 = vst.msk [vmem:[%s284 + $0x38] sm:$0xff] %vm1068, 0.0
      %s1077 = smul.u32 8, %s17
      %p1078 = scmp.lt.s32.totalorder %s1077, 15
      %s1079 = scalar_select %p1078, %s1077, 15
      %s1080 = smul.addr %s1079, 8
      %s1081 = scalar_lea.vmem %s4, %s1080
      %s1082 = smul.u32 8, %s17
      %p1083 = scmp.lt.s32.totalorder %s1082, 15
      %s1084 = scalar_select %p1083, %s1082, 15
      %s1085 = smul.addr %s1084, 8
      %s1086 = scalar_lea.vmem %s5, %s1085
      // Predicated region
      $region37: #{tpu_custom_call.1} parent=35 // pred_check
        %p1087 = pneg %p134
      $region38: #{tpu_custom_call.1} parent=35 // pred_check_branch
        %1089 = sbr.rel (%p1087) target = $region40
      $region39: #{tpu_custom_call.1} parent=35 // pred_region
        %s1090 = smul.u32 8, %s17
      $region40: #{tpu_custom_call.1} parent=35 // pred_fallthru
        _
      // Predicated region
      $region41: #{tpu_custom_call.1} parent=35 // pred_check
        %p1091 = pneg %p160
      $region42: #{tpu_custom_call.1} parent=35 // pred_check_branch
        %1093 = sbr.rel (%p1091) target = $region44
      $region43: #{tpu_custom_call.1} parent=35 // pred_region
        %s1094 = smul.u32 8, %s17
      $region44: #{tpu_custom_call.1} parent=35 // pred_fallthru
        _
    $region36: #{tpu_custom_call.1} parent=5 // pred_fallthru
      _
    %p1095 = scmp.le.s32.totalorder 2, %s12
    // Predicated region
    $region45: #{tpu_custom_call.1} parent=5 // pred_check
      %p1096 = pneg %p1095
    $region46: #{tpu_custom_call.1} parent=5 // pred_check_branch
      %1098 = sbr.rel (%p1096) target = $region48
    $region47: #{tpu_custom_call.1} parent=5 // pred_region
      %s1099 = ssub.s32 %s12, 2
      // Predicated region
      $region49: #{tpu_custom_call.1} parent=47 // pred_check
        %p1100 = pneg %p140
      $region50: #{tpu_custom_call.1} parent=47 // pred_check_branch
        %1102 = sbr.rel (%p1100) target = $region52
      $region51: #{tpu_custom_call.1} parent=47 // pred_region
        %s1103 = smul.u32 8, %s18
        %p1104 = scmp.lt.s32.totalorder %s1103, 15
        %s1105 = scalar_select %p1104, %s1103, 15
        %s1106 = smul.addr %s1105, 8
        %s1107 = scalar_lea.vmem %s4, %s1106
      $region52: #{tpu_custom_call.1} parent=47 // pred_fallthru
        _
      // Predicated region
      $region53: #{tpu_custom_call.1} parent=47 // pred_check
        %p1108 = pneg %p166
      $region54: #{tpu_custom_call.1} parent=47 // pred_check_branch
        %1110 = sbr.rel (%p1108) target = $region56
      $region55: #{tpu_custom_call.1} parent=47 // pred_region
        %s1111 = smul.u32 8, %s18
        %p1112 = scmp.lt.s32.totalorder %s1111, 15
        %s1113 = scalar_select %p1112, %s1111, 15
        %s1114 = smul.addr %s1113, 8
        %s1115 = scalar_lea.vmem %s5, %s1114
      $region56: #{tpu_custom_call.1} parent=47 // pred_fallthru
        _
    $region48: #{tpu_custom_call.1} parent=5 // pred_fallthru
      _
  $region6: #{tpu_custom_call.1} parent=0 // loop_footer
    %s16 = sadd.s32 1, %s12
  $region7: #{tpu_custom_call.1} parent=0 // loop_footer_branch
    %11 = sbr.rel target = $region3
  $region8: #{tpu_custom_call.1} parent=0 // loop_exit
    _

</llo_original>
